<compile_context>
chip_gen: v7x
topology: tpu7x:2x2x1
jax: 0.10.0
libtpu: 0.0.40
codegen_flags: <defaults>
</compile_context>

<pallas_src>
import functools

import jax
import jax.numpy as jnp
from jax import lax
from jax.experimental import pallas as pl
from jax.experimental.pallas import tpu as pltpu


def _round_down(x, m):
    return (x // m) * m


def _round_up(x, m):
    return ((x + m - 1) // m) * m


def _chip_budgets():
    """Return (target_tile_bytes, scoped_vmem_cap_bytes), chip-aware."""
    vmem_cap = 64 * 1024 * 1024  # conservative default (v7x-sized)
    try:
        info = pltpu.get_tpu_info()
        vmem_cap = int(getattr(info, "vmem_capacity_bytes", vmem_cap))
    except Exception:
        pass
    if vmem_cap <= 80 * 1024 * 1024:
        # v7x-class: 64 MiB physical VMEM, ~3.2 TB/s HBM per TC.  ~8 MiB tiles
        # amortize the ~0.35 us per-step overhead; double-buffered in+out
        # (~32 MiB) stays under a ~40 MiB scoped cap with headroom.
        return 8 * 1024 * 1024, 40 * 1024 * 1024
    # v5e / v6e class: 128 MiB physical VMEM.  Same 8 MiB tile target (free
    # win on v6e, neutral on v5e); allow the scoped limit up to ~100 MiB so
    # large-H*W single-pass tiling is not forced onto the slower two-pass
    # path earlier than necessary.
    return 8 * 1024 * 1024, 100 * 1024 * 1024


# ---------------------------------------------------------------------------
# Single-pass kernel: the whole H*W extent fits in one lane-axis tile.
# ---------------------------------------------------------------------------
def _channel_norm_kernel(x_ref, o_ref, *, inv_hw):
    # x_ref: (row_tile, HW) block in VMEM.
    x = x_ref[...]
    # Accumulate the spatial sum in f32 regardless of input dtype, without
    # materializing an f32 copy of the whole tile.
    row_sum = jnp.sum(x, axis=1, keepdims=True, dtype=jnp.float32)  # (rows, 1)
    mean = row_sum * inv_hw
    # Subtract in the input dtype (native bf16 VALU on v6e/v7x; exact for f32).
    o_ref[...] = (x - mean.astype(x.dtype)).astype(o_ref.dtype)


# ---------------------------------------------------------------------------
# Two-pass kernel for large H*W: grid = (row_blocks, 2 passes, hw_chunks).
# Pass 0 accumulates per-row sums into a VMEM scratch; pass 1 re-streams the
# chunks and subtracts the mean.  The output window is parked on chunk 0
# during pass 0 (never written, never flushed), so each output block is
# written back exactly once during pass 1.
# ---------------------------------------------------------------------------
def _channel_norm_two_pass_kernel(x_ref, o_ref, acc_ref, *, hw, inv_hw):
    p = pl.program_id(1)
    j = pl.program_id(2)
    rows, chunk = x_ref.shape
    # Lane mask for the (possibly partial) last HW chunk.
    col = j * chunk + lax.broadcasted_iota(jnp.int32, (rows, chunk), 1)
    valid = col < hw

    @pl.when(p == 0)
    def _():
        @pl.when(j == 0)
        def _():
            acc_ref[...] = jnp.zeros_like(acc_ref)

        x = x_ref[...]
        xz = jnp.where(valid, x, jnp.zeros_like(x))
        acc_ref[...] += jnp.sum(xz, axis=1, keepdims=True, dtype=jnp.float32)

    @pl.when(p == 1)
    def _():
        x = x_ref[...]
        mean = (acc_ref[...] * inv_hw).astype(x.dtype)
        o_ref[...] = (x - mean).astype(o_ref.dtype)


def channel_norm(x, param=None, *, donate_input=False, max_tile_bytes=None):
    """ChannelNorm forward.  x: (B, C, H, W).

    `param` is accepted for API parity with the PyTorch module but unused
    (affine is hard-coded to False there).  `donate_input=True` aliases the
    output onto the input buffer (only useful when the caller donates x).
    `max_tile_bytes` is a tuning/testing knob overriding the VMEM tile budget.
    """
    B, C, H, W = x.shape
    if not jnp.issubdtype(x.dtype, jnp.floating):
        raise TypeError(
            f"ChannelNorm mean-centering needs a floating dtype; got {x.dtype}.")
    HW = H * W
    BC = B * C
    x2 = x.reshape(BC, HW)

    itemsize = jnp.dtype(x.dtype).itemsize
    # Sublane-packing-aware row multiple: f32 -> 8, bf16 -> 16.
    row_multiple = {4: 8, 2: 16, 1: 32}.get(itemsize, 8)

    target_tile_bytes, vmem_cap = _chip_budgets()
    if max_tile_bytes is None:
        # Double-buffered input + output ~= 4x tile; keep within the cap.
        max_tile_bytes = vmem_cap // 4
    target_tile_bytes = min(target_tile_bytes, max_tile_bytes)

    row_bytes = HW * itemsize
    inv_hw = float(1.0 / HW)
    io_alias = {0: 0} if donate_input else {}

    # Single pass is feasible iff the minimal legal row tile (full HW wide)
    # fits the tile budget.
    single_pass_ok = (min(BC, row_multiple) * row_bytes) <= max_tile_bytes

    if single_pass_ok:
        rows_fit = _round_down(max(target_tile_bytes // row_bytes, 1),
                               row_multiple)
        max_rows = max(row_multiple, rows_fit)
        if BC <= max_rows:
            if BC >= 2 * row_multiple:
                # Guarantee >= 2 grid steps so both v7x TensorCores engage and
                # the DMA/compute/writeback pipeline has work to overlap.
                row_tile = _round_up(pl.cdiv(BC, 2), row_multiple)
            else:
                row_tile = BC  # full-dim block is always a legal block shape
        else:
            row_tile = max_rows  # multiple of row_multiple; padded last block OK

        tile_bytes = row_tile * row_bytes
        vmem_limit = int(max(32 * 1024 * 1024,
                             4 * tile_bytes + 8 * 1024 * 1024))
        grid = (pl.cdiv(BC, row_tile),)

        kernel = functools.partial(_channel_norm_kernel, inv_hw=inv_hw)
        cost = pl.CostEstimate(
            flops=2 * BC * HW,
            transcendentals=0,
            bytes_accessed=2 * BC * HW * itemsize,
        )
        out2 = pl.pallas_call(
            kernel,
            out_shape=jax.ShapeDtypeStruct((BC, HW), x.dtype),
            grid_spec=pltpu.PrefetchScalarGridSpec(
                num_scalar_prefetch=0,
                grid=grid,
                in_specs=[pl.BlockSpec((row_tile, HW), lambda i: (i, 0))],
                out_specs=pl.BlockSpec((row_tile, HW), lambda i: (i, 0)),
            ),
            compiler_params=pltpu.CompilerParams(
                dimension_semantics=("parallel",),
                vmem_limit_bytes=vmem_limit,
            ),
            cost_estimate=cost,
            input_output_aliases=io_alias,
        )(x2)
    else:
        # Large H*W: HW-chunked two-pass scheme (1.5x HBM traffic, fits VMEM).
        rows = row_multiple if BC >= row_multiple else BC
        hw_chunk = max(128, _round_down(target_tile_bytes // (rows * itemsize),
                                        128))
        hw_chunk = min(hw_chunk, _round_up(HW, 128))
        tile_bytes = rows * hw_chunk * itemsize
        vmem_limit = int(max(32 * 1024 * 1024,
                             4 * tile_bytes + 8 * 1024 * 1024))
        grid = (pl.cdiv(BC, rows), 2, pl.cdiv(HW, hw_chunk))

        kernel = functools.partial(_channel_norm_two_pass_kernel,
                                   hw=HW, inv_hw=inv_hw)
        cost = pl.CostEstimate(
            flops=3 * BC * HW,
            transcendentals=0,
            bytes_accessed=3 * BC * HW * itemsize,  # 2 reads + 1 write
        )
        out2 = pl.pallas_call(
            kernel,
            out_shape=jax.ShapeDtypeStruct((BC, HW), x.dtype),
            grid_spec=pltpu.PrefetchScalarGridSpec(
                num_scalar_prefetch=0,
                grid=grid,
                in_specs=[pl.BlockSpec((rows, hw_chunk),
                                       lambda i, p, j: (i, j))],
                # Park the output window on chunk 0 during pass 0 (no write,
                # no flush); pass 1 walks the chunks -> each output block is
                # written back exactly once.
                out_specs=pl.BlockSpec((rows, hw_chunk),
                                       lambda i, p, j: (i, p * j)),
                scratch_shapes=[pltpu.VMEM((rows, 1), jnp.float32)],
            ),
            compiler_params=pltpu.CompilerParams(
                dimension_semantics=("parallel", "arbitrary", "arbitrary"),
                vmem_limit_bytes=vmem_limit,
            ),
            cost_estimate=cost,
            input_output_aliases=io_alias,
        )(x2)

    return out2.reshape(B, C, H, W)


if __name__ == "__main__":
    key = jax.random.PRNGKey(0)

    def ref_fn(v):
        vf = v.astype(jnp.float32)
        b, c = v.shape[0], v.shape[1]
        m = jnp.mean(vf.reshape(b, c, -1), axis=2)
        return vf - m[:, :, None, None]

    # 1) Main path: small (B, C, H, W) f32, single-pass kernel.
    B, C, H, W = 2, 4, 16, 16
    x = jax.random.normal(key, (B, C, H, W), dtype=jnp.float32)
    # Deterministic parameter matching nn.Parameter(torch.zeros(channel));
    # unused at runtime since affine is hard-coded to False in the module.
    param = jnp.zeros((C,), dtype=jnp.float32)
    out = jax.block_until_ready(channel_norm(x, param))
    assert jnp.allclose(out, ref_fn(x), atol=1e-5, rtol=1e-5), "single-pass mismatch"

    # 2) Large-H*W fallback path exercised on a small, non-128-multiple
    #    spatial size by forcing a tiny tile budget (covers the HW-chunked
    #    two-pass kernel, lane masking, and padded row blocks).
    x2 = jax.random.normal(jax.random.PRNGKey(0), (2, 3, 16, 20),
                           dtype=jnp.float32)
    out2 = jax.block_until_ready(channel_norm(x2, max_tile_bytes=4096))
    assert jnp.allclose(out2, ref_fn(x2), atol=1e-5, rtol=1e-5), "two-pass mismatch"

    # 3) bf16 smoke test (sum accumulated in f32; subtract in bf16).
    xb = x.astype(jnp.bfloat16)
    outb = jax.block_until_ready(channel_norm(xb, param))
    assert jnp.allclose(outb.astype(jnp.float32), ref_fn(xb), atol=5e-2), "bf16 mismatch"

    print("KERNEL_OK")
</pallas_src>

<mosaic_0001>
module attributes {stable_mosaic.version = 11 : i64} {
  func.func @_channel_norm_kernel(%arg0: i32, %arg1: memref<8x256xf32, #tpu.memory_space<vmem>>, %arg2: memref<8x256xf32, #tpu.memory_space<vmem>>) attributes {dimension_semantics = [#tpu.dimension_semantics<parallel>], iteration_bounds = array<i64: 1>, scalar_prefetch = 0 : i64, scratch_operands = 0 : i64, tpu.core_type = #tpu.core_type<tc>, window_params = [{transform_indices = @transform_0, window_bounds = array<i64: 8, 256>}, {transform_indices = @transform_1, window_bounds = array<i64: 8, 256>}]} {
    %c0 = arith.constant 0 : index
    %c0_0 = arith.constant 0 : index
    %0 = vector.load %arg1[%c0, %c0_0] : memref<8x256xf32, #tpu.memory_space<vmem>>, vector<8x256xf32>
    %cst = arith.constant dense<0.000000e+00> : vector<8xf32>
    %1 = vector.multi_reduction <add>, %0, %cst [1] : vector<8x256xf32> to vector<8xf32>
    %2 = vector.shape_cast %1 : vector<8xf32> to vector<8x1xf32>
    %cst_1 = arith.constant 3.906250e-03 : f32
    %3 = vector.broadcast %cst_1 : f32 to vector<8x1xf32>
    %4 = arith.mulf %2, %3 : vector<8x1xf32>
    %5 = vector.broadcast %4 : vector<8x1xf32> to vector<8x256xf32>
    %6 = arith.subf %0, %5 : vector<8x256xf32>
    %c0_2 = arith.constant 0 : index
    %c0_3 = arith.constant 0 : index
    %7 = vector.load %arg2[%c0_2, %c0_3] : memref<8x256xf32, #tpu.memory_space<vmem>>, vector<8x256xf32>
    tpu.vector_store %arg2[%c0_2, %c0_3], %6 {strides = array<i32>} : memref<8x256xf32, #tpu.memory_space<vmem>>, vector<8x256xf32>,
    return
  }
  func.func @transform_0(%arg0: i32) -> (i32, i32) {
    %c0_i32 = arith.constant 0 : i32
    %c0_i32_0 = arith.constant 0 : i32
    return %arg0, %c0_i32 : i32, i32
  }
  func.func @transform_1(%arg0: i32) -> (i32, i32) {
    %c0_i32 = arith.constant 0 : i32
    %c0_i32_0 = arith.constant 0 : i32
    return %arg0, %c0_i32 : i32, i32
  }
}

</mosaic_0001>

<llo_original>
// kernel: tpu_custom_call.1
$region0: #{tpu_custom_call.1}
  #allocation0 [shape = 'u32[]', space=smem, size = 0x4, offset = 0x4, fixed_abs, tag = 'smem constant byte address 0x4 - core index']
  #allocation1 [shape = 'u32[144,128]{1,0:T(1,128)}', space=vmem, size = 0x12000, scoped, tag = 'internal scratch']
  %s0 = inlined_call_operand.hbm [shape: f32[8,256], index: 0, kind: input, shape index: {}]
  %s1 = inlined_call_operand.hbm [shape: f32[8,256], index: 1, kind: output, shape index: {}]
  %s2 = sld [smem:[#allocation0]]
  $region18: #{tpu_custom_call.1} parent=0
    _
  %s4 = ssub.s32 1, %s2
  %s5 = scalar_select 0, %s4, %s2
  $region1: #{tpu_custom_call.1} parent=0
    #allocation2 [shape = 'u8[8192]{0}', space=vmem, size = 0x2000, scoped, tag = 'input window, operand 0, single buffered']
    #allocation3 [shape = 's32[1]{0}', space=sflag, size = 0x4, scoped, tag = 'scoped memory for tpu_custom_call.1']
    #allocation4 [shape = 's32[1]{0}', space=sflag, size = 0x4, scoped, tag = 'scoped memory for tpu_custom_call.1']
    #allocation5 [shape = 'u8[8192]{0}', space=vmem, size = 0x2000, scoped, tag = 'output window, operand 0, single buffered']
    %6 = vsyncpa [#allocation3], 0
    %7 = vsyncpa [#allocation4], 0
    // Predicated region
    $region2: #{tpu_custom_call.1} parent=1 // pred_check
      _
    $region3: #{tpu_custom_call.1} parent=1 // pred_check_branch
      %9 = sbr.rel (0) target = $region5
    $region4: #{tpu_custom_call.1} parent=1 // pred_region
      %s11 = ssub.s32 256, 256
      %12 = vsyncadd [#allocation3], %s11
      %s14 = sshll.u32 [#allocation2], 4
      %s15 = int_to_ptr.vmem [resolvable:$true] %s14
      %17 = dma.hbm_to_vmem [thread:$0]  %s0, 256, %s15, [#allocation3]
    $region5: #{tpu_custom_call.1} parent=1 // pred_fallthru
      _
    // Predicated region
    $region6: #{tpu_custom_call.1} parent=1 // pred_check
      _
    $region7: #{tpu_custom_call.1} parent=1 // pred_check_branch
      %19 = sbr.rel (0) target = $region9
    $region8: #{tpu_custom_call.1} parent=1 // pred_region
      %20 = dma.done [#allocation3], 256
    $region9: #{tpu_custom_call.1} parent=1 // pred_fallthru
      _
    %v21 = vld [vmem:[#allocation2] sm:$0xff]
    %v22 = vld [vmem:[#allocation2 + $0x8] sm:$0xff]
    %v23 = vadd.f32 %v21, %v22
    %24 = vadd.xlane.f32.xlu0 %v23
    %v25 = vpop.xlane.xlu0 %24
    %v26 = vmul.f32 %v25, 0.00390625
    %v27 = vsub.f32 %v21, %v26
    %v28 = vsub.f32 %v22, %v26
    %29 = vst [vmem:[#allocation5] sm:$0xff] %v27
    %30 = vst [vmem:[#allocation5 + $0x8] sm:$0xff] %v28
    // Predicated region
    $region10: #{tpu_custom_call.1} parent=1 // pred_check
      _
    $region11: #{tpu_custom_call.1} parent=1 // pred_check_branch
      %32 = sbr.rel (0) target = $region13
    $region12: #{tpu_custom_call.1} parent=1 // pred_region
      %s34 = ssub.s32 256, 256
      %35 = vsyncadd [#allocation4], %s34
      %s37 = sshll.u32 [#allocation5], 4
      %s38 = int_to_ptr.vmem [resolvable:$true] %s37
      %40 = dma.vmem_to_hbm [thread:$0]  %s38, 256, %s1, [#allocation4]
    $region13: #{tpu_custom_call.1} parent=1 // pred_fallthru
      _
    // Predicated region
    $region14: #{tpu_custom_call.1} parent=1 // pred_check
      _
    $region15: #{tpu_custom_call.1} parent=1 // pred_check_branch
      %42 = sbr.rel (0) target = $region17
    $region16: #{tpu_custom_call.1} parent=1 // pred_region
      %43 = dma.done [#allocation4], 256
    $region17: #{tpu_custom_call.1} parent=1 // pred_fallthru
      _
    %44 = vsyncpa [#allocation3], 1
    %45 = vsyncpa [#allocation4], 1

</llo_original>
